<compile_context>
chip_gen: v6e
topology: v6e:2x2x1
jax: 0.10.0
libtpu: 0.0.40
codegen_flags: <defaults>
</compile_context>

<pallas_src>
import functools

import jax
import jax.numpy as jnp
from jax.experimental import pallas as pl
from jax.experimental.pallas import tpu as pltpu


def _round_up(x, m):
    return (x + m - 1) // m * m


def lgm_kernel(feat_ref, fn2_ref, centers_t_ref, cn2_ref, label_ref,
               logits_ref, margin_ref, picked_ref, *,
               alpha, tc, centers_resident, precision):
    j = pl.program_id(1)

    f = feat_ref[...]                                   # (tb, Dp) f32
    if centers_resident:
        # Full centers^T lives in VMEM; slice out this class tile (lane offset
        # is a multiple of 128 by construction).
        off = pl.multiple_of(j * tc, 128)
        ct = centers_t_ref[:, pl.ds(off, tc)]           # (Dp, tc)
    else:
        ct = centers_t_ref[...]                         # (Dp, tc)

    # Cross term on the MXU; f32 accumulation.
    cross = jnp.dot(f, ct, preferred_element_type=jnp.float32,
                    precision=precision)                # (tb, tc)

    # Hoisted norms: fn2 (tb,1) and cn2 (1,tc) were computed once in the
    # wrapper.  Clamp guards the cancellation at reduced matmul precision.
    dist = jnp.maximum(fn2_ref[...] + cn2_ref[...] - 2.0 * cross, 0.0)
    logits = -0.5 * dist

    # Fused one-hot: select instead of cast + multiply.
    lab = label_ref[...]                                          # (tb, 1) i32
    col = jax.lax.broadcasted_iota(jnp.int32, dist.shape, 1) + j * tc
    is_lab = col == lab                                           # (tb, tc)

    logits_ref[...] = logits.astype(logits_ref.dtype)
    margin_ref[...] = jnp.where(is_lab, logits * (1.0 + alpha),
                                logits).astype(margin_ref.dtype)

    # Per-row squared distance to the labelled center, accumulated over the
    # class-tile ("arbitrary") grid axis.
    pick = jnp.sum(jnp.where(is_lab, dist, 0.0), axis=1, keepdims=True)

    @pl.when(j == 0)
    def _init():
        picked_ref[...] = jnp.zeros_like(picked_ref)

    picked_ref[...] += pick


def lgm_loss_v0(feat, label, centers, alpha, *, tb=None, tc=None,
                out_dtype=jnp.float32, highest_cross_precision=True,
                core_parallel_batch=False):
    B, D = feat.shape
    C, _ = centers.shape

    Dp = _round_up(D, 128)                      # lane-dense contraction axis
    if tb is None:
        tb = min(256, _round_up(B, 8))          # batch tile (multiple of 8)
    if tc is None:
        tc = min(512, _round_up(C, 128))        # class tile (multiple of 128)
    Bp = _round_up(B, tb)
    Cp = _round_up(C, tc)
    # TODO(synk): for very large D, add a K-axis (Dp tiling + f32 acc scratch)
    # so the feat/centers tiles stay inside v7x's 64 MiB VMEM.

    # Zero padding is exact for the distance math; padded rows/cols are sliced
    # off before returning.
    feat_p = jnp.zeros((Bp, Dp), jnp.float32).at[:B, :D].set(
        feat.astype(jnp.float32))
    centers_t = jnp.zeros((Dp, Cp), jnp.float32).at[:D, :C].set(
        centers.astype(jnp.float32).T)
    label_p = jnp.zeros((Bp, 1), jnp.int32).at[:B, 0].set(
        label.astype(jnp.int32))

    # Hoisted, exact-f32 norms (computed once, O(B*D + C*D) outside the kernel).
    fn2 = jnp.sum(feat_p * feat_p, axis=1, keepdims=True)          # (Bp, 1)
    cn2 = jnp.sum(centers_t * centers_t, axis=0, keepdims=True)    # (1, Cp)

    n_btiles = Bp // tb
    n_ctiles = Cp // tc
    # Keep centers^T resident in VMEM only when it would otherwise be
    # re-streamed from HBM (multiple batch AND class tiles) and it is small.
    centers_resident = (n_btiles > 1 and n_ctiles > 1
                        and Dp * Cp * 4 <= 4 * 1024 * 1024)
    if centers_resident:
        centers_spec = pl.BlockSpec((Dp, Cp), lambda i, j: (0, 0))
    else:
        centers_spec = pl.BlockSpec((Dp, tc), lambda i, j: (0, j))

    grid = (n_btiles, n_ctiles)
    grid_spec = pltpu.PrefetchScalarGridSpec(
        num_scalar_prefetch=0,
        grid=grid,
        in_specs=[
            pl.BlockSpec((tb, Dp), lambda i, j: (i, 0)),   # feat tile
            pl.BlockSpec((tb, 1), lambda i, j: (i, 0)),    # ||feat||^2
            centers_spec,                                   # centers^T
            pl.BlockSpec((1, tc), lambda i, j: (0, j)),    # ||centers||^2
            pl.BlockSpec((tb, 1), lambda i, j: (i, 0)),    # labels
        ],
        out_specs=(
            pl.BlockSpec((tb, tc), lambda i, j: (i, j)),   # logits
            pl.BlockSpec((tb, tc), lambda i, j: (i, j)),   # margin_logits
            pl.BlockSpec((tb, 1), lambda i, j: (i, 0)),    # picked (acc over j)
        ),
    )

    out_itemsize = jnp.dtype(out_dtype).itemsize
    centers_bytes = (Dp * Cp * 4 if centers_resident
                     else n_btiles * Dp * Cp * 4)
    cost = pl.CostEstimate(
        flops=2 * Bp * Cp * Dp + 8 * Bp * Cp,
        transcendentals=0,
        bytes_accessed=(Bp * Dp * 4                 # feat (read once per i)
                        + 2 * Bp * 4                # fn2 + label
                        + centers_bytes             # centers^T (actual traffic)
                        + n_btiles * Cp * 4         # cn2 re-read per batch tile
                        + 2 * Bp * Cp * out_itemsize  # logits + margin writes
                        + Bp * 4),                  # picked
    )

    # Explicit VMEM budget (double-buffered tiles); cap at v7x physical 64 MiB.
    vmem_bytes = 2 * (tb * Dp * 4
                      + Dp * (Cp if centers_resident else tc) * 4
                      + (2 * tb + tc) * 4
                      + 2 * tb * tc * out_itemsize
                      + tb * 4)
    vmem_limit = int(min(max(vmem_bytes + (8 << 20), 32 << 20), 64 << 20))

    batch_sem = pltpu.CORE_PARALLEL if core_parallel_batch else "parallel"
    precision = (jax.lax.Precision.HIGHEST if highest_cross_precision else None)

    logits_p, margin_p, picked_p = pl.pallas_call(
        functools.partial(lgm_kernel, alpha=float(alpha), tc=tc,
                          centers_resident=centers_resident,
                          precision=precision),
        out_shape=(
            jax.ShapeDtypeStruct((Bp, Cp), out_dtype),
            jax.ShapeDtypeStruct((Bp, Cp), out_dtype),
            jax.ShapeDtypeStruct((Bp, 1), jnp.float32),
        ),
        grid_spec=grid_spec,
        compiler_params=pltpu.CompilerParams(
            dimension_semantics=(batch_sem, "arbitrary"),
            vmem_limit_bytes=vmem_limit),
        cost_estimate=cost,
    )(feat_p, fn2, centers_t, cn2, label_p)

    logits = logits_p[:B, :C]
    margin_logits = margin_p[:B, :C]
    # likelihood = (1/B) * sum_b ||feat[b] - centers[label[b]]||^2 / 2
    likelihood = 0.5 * jnp.sum(picked_p[:B, 0]) / B
    return logits, margin_logits, likelihood


if __name__ == "__main__":
    num_classes, feat_dim, batch, alpha = 10, 32, 8, 0.1

    key = jax.random.PRNGKey(0)
    k1, k2, k3 = jax.random.split(key, 3)
    # nn.Parameter(torch.randn(num_classes, feat_dim)) -> deterministic normal init
    centers = jax.random.normal(k1, (num_classes, feat_dim), jnp.float32)
    feat = jax.random.normal(k2, (batch, feat_dim), jnp.float32)
    label = jax.random.randint(k3, (batch,), 0, num_classes, jnp.int32)

    logits, margin_logits, likelihood = jax.block_until_ready(
        lgm_loss_v0(feat, label, centers, alpha))

    # Pure-JAX reference (mirrors the PyTorch module exactly).
    diff = feat[:, None, :] - centers[None, :, :]
    dist = jnp.sum(diff * diff, axis=-1)
    y = jax.nn.one_hot(label, num_classes, dtype=jnp.float32) * alpha + 1.0
    ref_logits = -0.5 * dist
    ref_margin = -0.5 * dist * y
    cdiff = feat - centers[label]
    ref_like = jnp.sum(cdiff ** 2) / (2.0 * batch)

    assert logits.shape == (batch, num_classes)
    assert margin_logits.shape == (batch, num_classes)
    assert jnp.allclose(logits, ref_logits, atol=1e-4, rtol=1e-4)
    assert jnp.allclose(margin_logits, ref_margin, atol=1e-4, rtol=1e-4)
    assert jnp.allclose(likelihood, ref_like, atol=1e-4, rtol=1e-4)
    print("KERNEL_OK")
</pallas_src>

<mosaic_0001>
module attributes {stable_mosaic.version = 11 : i64} {
  func.func @lgm_kernel(%arg0: i32, %arg1: i32, %arg2: memref<8x128xf32, #tpu.memory_space<vmem>>, %arg3: memref<8x1xf32, #tpu.memory_space<vmem>>, %arg4: memref<128x128xf32, #tpu.memory_space<vmem>>, %arg5: memref<1x128xf32, #tpu.memory_space<vmem>>, %arg6: memref<8x1xi32, #tpu.memory_space<vmem>>, %arg7: memref<8x128xf32, #tpu.memory_space<vmem>>, %arg8: memref<8x128xf32, #tpu.memory_space<vmem>>, %arg9: memref<8x1xf32, #tpu.memory_space<vmem>>) attributes {dimension_semantics = [#tpu.dimension_semantics<parallel>, #tpu.dimension_semantics<arbitrary>], iteration_bounds = array<i64: 1, 1>, scalar_prefetch = 0 : i64, scratch_operands = 0 : i64, tpu.core_type = #tpu.core_type<tc>, window_params = [{transform_indices = @transform_0, window_bounds = array<i64: 8, 128>}, {transform_indices = @transform_1, window_bounds = array<i64: 8, 1>}, {transform_indices = @transform_2, window_bounds = array<i64: 128, 128>}, {transform_indices = @transform_3, window_bounds = array<i64: 1, 128>}, {transform_indices = @transform_4, window_bounds = array<i64: 8, 1>}, {transform_indices = @transform_5, window_bounds = array<i64: 8, 128>}, {transform_indices = @transform_6, window_bounds = array<i64: 8, 128>}, {transform_indices = @transform_7, window_bounds = array<i64: 8, 1>}]} {
    %c0 = arith.constant 0 : index
    %c0_0 = arith.constant 0 : index
    %0 = vector.load %arg2[%c0, %c0_0] : memref<8x128xf32, #tpu.memory_space<vmem>>, vector<8x128xf32>
    %c0_1 = arith.constant 0 : index
    %c0_2 = arith.constant 0 : index
    %1 = vector.load %arg4[%c0_1, %c0_2] : memref<128x128xf32, #tpu.memory_space<vmem>>, vector<128x128xf32>
    %cst = arith.constant dense<0.000000e+00> : vector<8x128xf32>
    %2 = tpu.matmul %0, %1, %cst {dimension_numbers = #tpu.dot_dimension_numbers<[1], [0], [0], [1], [0, 0, 1, 1], [], []>, precision = #tpu.contract_precision<fp32>} : vector<8x128xf32>, vector<128x128xf32>, vector<8x128xf32> -> vector<8x128xf32>
    %c0_3 = arith.constant 0 : index
    %c0_4 = arith.constant 0 : index
    %3 = vector.load %arg3[%c0_3, %c0_4] : memref<8x1xf32, #tpu.memory_space<vmem>>, vector<8x1xf32>
    %c0_5 = arith.constant 0 : index
    %c0_6 = arith.constant 0 : index
    %4 = vector.load %arg5[%c0_5, %c0_6] : memref<1x128xf32, #tpu.memory_space<vmem>>, vector<1x128xf32>
    %5 = vector.broadcast %3 : vector<8x1xf32> to vector<8x128xf32>
    %6 = vector.broadcast %4 : vector<1x128xf32> to vector<8x128xf32>
    %7 = arith.addf %5, %6 : vector<8x128xf32>
    %cst_7 = arith.constant 2.000000e+00 : f32
    %8 = vector.broadcast %cst_7 : f32 to vector<8x128xf32>
    %9 = arith.mulf %8, %2 : vector<8x128xf32>
    %10 = arith.subf %7, %9 : vector<8x128xf32>
    %cst_8 = arith.constant 0.000000e+00 : f32
    %11 = vector.broadcast %cst_8 : f32 to vector<8x128xf32>
    %12 = arith.maximumf %10, %11 : vector<8x128xf32>
    %cst_9 = arith.constant -5.000000e-01 : f32
    %13 = vector.broadcast %cst_9 : f32 to vector<8x128xf32>
    %14 = arith.mulf %13, %12 : vector<8x128xf32>
    %c0_10 = arith.constant 0 : index
    %c0_11 = arith.constant 0 : index
    %15 = vector.load %arg6[%c0_10, %c0_11] : memref<8x1xi32, #tpu.memory_space<vmem>>, vector<8x1xi32>
    %16 = tpu.iota {dimensions = array<i32: 1>} : vector<8x128xi32>
    %c128_i32 = arith.constant 128 : i32
    %17 = arith.muli %arg1, %c128_i32 : i32
    %18 = vector.broadcast %17 : i32 to vector<8x128xi32>
    %19 = arith.addi %16, %18 : vector<8x128xi32>
    %20 = vector.broadcast %15 : vector<8x1xi32> to vector<8x128xi32>
    %21 = arith.cmpi eq, %19, %20 : vector<8x128xi32>
    %c0_12 = arith.constant 0 : index
    %c0_13 = arith.constant 0 : index
    %22 = vector.load %arg7[%c0_12, %c0_13] : memref<8x128xf32, #tpu.memory_space<vmem>>, vector<8x128xf32>
    tpu.vector_store %arg7[%c0_12, %c0_13], %14 {strides = array<i32>} : memref<8x128xf32, #tpu.memory_space<vmem>>, vector<8x128xf32>,
    %cst_14 = arith.constant 1.100000e+00 : f32
    %23 = vector.broadcast %cst_14 : f32 to vector<8x128xf32>
    %24 = arith.mulf %14, %23 : vector<8x128xf32>
    %25 = arith.select %21, %24, %14 : vector<8x128xi1>, vector<8x128xf32>
    %c0_15 = arith.constant 0 : index
    %c0_16 = arith.constant 0 : index
    %26 = vector.load %arg8[%c0_15, %c0_16] : memref<8x128xf32, #tpu.memory_space<vmem>>, vector<8x128xf32>
    tpu.vector_store %arg8[%c0_15, %c0_16], %25 {strides = array<i32>} : memref<8x128xf32, #tpu.memory_space<vmem>>, vector<8x128xf32>,
    %cst_17 = arith.constant 0.000000e+00 : f32
    %27 = vector.broadcast %cst_17 : f32 to vector<8x128xf32>
    %28 = arith.select %21, %12, %27 : vector<8x128xi1>, vector<8x128xf32>
    %cst_18 = arith.constant dense<0.000000e+00> : vector<8xf32>
    %29 = vector.multi_reduction <add>, %28, %cst_18 [1] : vector<8x128xf32> to vector<8xf32>
    %30 = vector.shape_cast %29 : vector<8xf32> to vector<8x1xf32>
    %c0_i32 = arith.constant 0 : i32
    %31 = arith.cmpi eq, %arg1, %c0_i32 : i32
    %32 = arith.extui %31 : i1 to i32
    %c0_i32_19 = arith.constant 0 : i32
    %33 = arith.cmpi ne, %32, %c0_i32_19 : i32
    scf.if %33 {
      %cst_24 = arith.constant 0.000000e+00 : f32
      %37 = vector.broadcast %cst_24 : f32 to vector<8x1xf32>
      %c0_25 = arith.constant 0 : index
      %c0_26 = arith.constant 0 : index
      %38 = vector.load %arg9[%c0_25, %c0_26] : memref<8x1xf32, #tpu.memory_space<vmem>>, vector<8x1xf32>
      tpu.vector_store %arg9[%c0_25, %c0_26], %37 {strides = array<i32>} : memref<8x1xf32, #tpu.memory_space<vmem>>, vector<8x1xf32>,
    } else {
    }
    %c0_20 = arith.constant 0 : index
    %c0_21 = arith.constant 0 : index
    %34 = vector.load %arg9[%c0_20, %c0_21] : memref<8x1xf32, #tpu.memory_space<vmem>>, vector<8x1xf32>
    %35 = arith.addf %34, %30 : vector<8x1xf32>
    %c0_22 = arith.constant 0 : index
    %c0_23 = arith.constant 0 : index
    %36 = vector.load %arg9[%c0_22, %c0_23] : memref<8x1xf32, #tpu.memory_space<vmem>>, vector<8x1xf32>
    tpu.vector_store %arg9[%c0_22, %c0_23], %35 {strides = array<i32>} : memref<8x1xf32, #tpu.memory_space<vmem>>, vector<8x1xf32>,
    return
  }
  func.func @transform_0(%arg0: i32, %arg1: i32) -> (i32, i32) {
    %c0_i32 = arith.constant 0 : i32
    %c0_i32_0 = arith.constant 0 : i32
    return %arg0, %c0_i32 : i32, i32
  }
  func.func @transform_1(%arg0: i32, %arg1: i32) -> (i32, i32) {
    %c0_i32 = arith.constant 0 : i32
    %c0_i32_0 = arith.constant 0 : i32
    return %arg0, %c0_i32 : i32, i32
  }
  func.func @transform_2(%arg0: i32, %arg1: i32) -> (i32, i32) {
    %c0_i32 = arith.constant 0 : i32
    %c0_i32_0 = arith.constant 0 : i32
    return %c0_i32, %arg1 : i32, i32
  }
  func.func @transform_3(%arg0: i32, %arg1: i32) -> (i32, i32) {
    %c0_i32 = arith.constant 0 : i32
    %c0_i32_0 = arith.constant 0 : i32
    return %c0_i32, %arg1 : i32, i32
  }
  func.func @transform_4(%arg0: i32, %arg1: i32) -> (i32, i32) {
    %c0_i32 = arith.constant 0 : i32
    %c0_i32_0 = arith.constant 0 : i32
    return %arg0, %c0_i32 : i32, i32
  }
  func.func @transform_5(%arg0: i32, %arg1: i32) -> (i32, i32) {
    %c0_i32 = arith.constant 0 : i32
    return %arg0, %arg1 : i32, i32
  }
  func.func @transform_6(%arg0: i32, %arg1: i32) -> (i32, i32) {
    %c0_i32 = arith.constant 0 : i32
    return %arg0, %arg1 : i32, i32
  }
  func.func @transform_7(%arg0: i32, %arg1: i32) -> (i32, i32) {
    %c0_i32 = arith.constant 0 : i32
    %c0_i32_0 = arith.constant 0 : i32
    return %arg0, %c0_i32 : i32, i32
  }
}

</mosaic_0001>

<llo_original>
// kernel: tpu_custom_call.1
$region0: #{tpu_custom_call.1}
  #allocation0 [shape = 'u32[]', space=smem, size = 0x4, offset = 0x4, fixed_abs, tag = 'smem constant byte address 0x4 - core index']
  #allocation1 [shape = 'u32[144,128]{1,0:T(1,128)}', space=vmem, size = 0x12000, scoped, tag = 'internal scratch']
  %s0 = inlined_call_operand.vmem [shape: f32[8,128], index: 0, kind: input, shape index: {}]
  %s1 = inlined_call_operand.vmem [shape: f32[8,1], index: 1, kind: input, shape index: {}]
  %s2 = inlined_call_operand.hbm [shape: f32[128,128], index: 2, kind: input, shape index: {}]
  %s3 = inlined_call_operand.vmem [shape: f32[1,128], index: 3, kind: input, shape index: {}]
  %s4 = inlined_call_operand.vmem [shape: s32[8,1], index: 4, kind: input, shape index: {}]
  %s5 = inlined_call_operand.hbm [shape: f32[8,128], index: 5, kind: output, shape index: {0}]
  %s6 = inlined_call_operand.hbm [shape: f32[8,128], index: 6, kind: output, shape index: {1}]
  %s7 = inlined_call_operand.vmem [shape: f32[8,1], index: 7, kind: output, shape index: {2}]
  %8 = xla_tuple %s5, %s6, %s7
  %s9 = sld [smem:[#allocation0]]
  $region54: #{tpu_custom_call.1} parent=0
    _
  %s11 = ssub.s32 1, %s9
  %s12 = scalar_select 0, %s11, %s9
  $region1: #{tpu_custom_call.1} parent=0
    #allocation2 [shape = 'u8[65536]{0}', space=vmem, size = 0x10000, scoped, tag = 'input window, operand 2, single buffered']
    #allocation3 [shape = 's32[1]{0}', space=sflag, size = 0x4, scoped, tag = 'scoped memory for tpu_custom_call.1']
    #allocation4 [shape = 's32[1]{0}', space=sflag, size = 0x4, scoped, tag = 'scoped memory for tpu_custom_call.1']
    #allocation5 [shape = 'u8[4096]{0}', space=vmem, size = 0x1000, scoped, tag = 'output window, operand 0, single buffered']
    #allocation6 [shape = 'u8[4096]{0}', space=vmem, size = 0x1000, scoped, tag = 'output window, operand 1, single buffered']
    #allocation7 [shape = 's32[1]{0}', space=sflag, size = 0x4, scoped, tag = 'scoped memory for tpu_custom_call.1']
    %13 = vsyncpa [#allocation3], 0
    %14 = vsyncpa [#allocation4], 0
    %15 = vsyncpa [#allocation7], 0
    // Predicated region
    $region2: #{tpu_custom_call.1} parent=1 // pred_check
      _
    $region3: #{tpu_custom_call.1} parent=1 // pred_check_branch
      %17 = sbr.rel (0) target = $region5
    $region4: #{tpu_custom_call.1} parent=1 // pred_region
      _
    $region5: #{tpu_custom_call.1} parent=1 // pred_fallthru
      _
    // Predicated region
    $region6: #{tpu_custom_call.1} parent=1 // pred_check
      _
    $region7: #{tpu_custom_call.1} parent=1 // pred_check_branch
      %19 = sbr.rel (0) target = $region9
    $region8: #{tpu_custom_call.1} parent=1 // pred_region
      _
    $region9: #{tpu_custom_call.1} parent=1 // pred_fallthru
      _
    // Predicated region
    $region10: #{tpu_custom_call.1} parent=1 // pred_check
      _
    $region11: #{tpu_custom_call.1} parent=1 // pred_check_branch
      %21 = sbr.rel (0) target = $region13
    $region12: #{tpu_custom_call.1} parent=1 // pred_region
      %s23 = ssub.s32 2048, 2048
      %24 = vsyncadd [#allocation3], %s23
      %s25 = sshll.u32 [#allocation2], 4
      %s26 = int_to_ptr.vmem [resolvable:$true] %s25
      %31 = dma.hbm_to_vmem [thread:$0]  %s2, 2048, %s26, [#allocation3], 128, 128, 8
    $region13: #{tpu_custom_call.1} parent=1 // pred_fallthru
      _
    // Predicated region
    $region14: #{tpu_custom_call.1} parent=1 // pred_check
      _
    $region15: #{tpu_custom_call.1} parent=1 // pred_check_branch
      %33 = sbr.rel (0) target = $region17
    $region16: #{tpu_custom_call.1} parent=1 // pred_region
      _
    $region17: #{tpu_custom_call.1} parent=1 // pred_fallthru
      _
    // Predicated region
    $region18: #{tpu_custom_call.1} parent=1 // pred_check
      _
    $region19: #{tpu_custom_call.1} parent=1 // pred_check_branch
      %35 = sbr.rel (0) target = $region21
    $region20: #{tpu_custom_call.1} parent=1 // pred_region
      _
    $region21: #{tpu_custom_call.1} parent=1 // pred_fallthru
      _
    // Predicated region
    $region22: #{tpu_custom_call.1} parent=1 // pred_check
      _
    $region23: #{tpu_custom_call.1} parent=1 // pred_check_branch
      %37 = sbr.rel (0) target = $region25
    $region24: #{tpu_custom_call.1} parent=1 // pred_region
      %38 = dma.done [#allocation3], 2048
    $region25: #{tpu_custom_call.1} parent=1 // pred_fallthru
      _
    %v39 = vld [vmem:[%s0] sm:$0xff]
    %v40 = vld [vmem:[#allocation2] sm:$0xff]
    %v41 = vld [vmem:[#allocation2 + $0x8] sm:$0xff]
    %v42 = vld [vmem:[#allocation2 + $0x10] sm:$0xff]
    %v43 = vld [vmem:[#allocation2 + $0x18] sm:$0xff]
    %v44 = vld [vmem:[#allocation2 + $0x20] sm:$0xff]
    %v45 = vld [vmem:[#allocation2 + $0x28] sm:$0xff]
    %v46 = vld [vmem:[#allocation2 + $0x30] sm:$0xff]
    %v47 = vld [vmem:[#allocation2 + $0x38] sm:$0xff]
    %v48 = vld [vmem:[#allocation2 + $0x40] sm:$0xff]
    %v49 = vld [vmem:[#allocation2 + $0x48] sm:$0xff]
    %v50 = vld [vmem:[#allocation2 + $0x50] sm:$0xff]
    %v51 = vld [vmem:[#allocation2 + $0x58] sm:$0xff]
    %v52 = vld [vmem:[#allocation2 + $0x60] sm:$0xff]
    %v53 = vld [vmem:[#allocation2 + $0x68] sm:$0xff]
    %v54 = vld [vmem:[#allocation2 + $0x70] sm:$0xff]
    %v55 = vld [vmem:[#allocation2 + $0x78] sm:$0xff]
    %56 = vmatprep.subr.mxu0 0.0
    %v57 = vand.u32 %v55, 4294901760
    %58 = vmatpush1.msra.mxu0 %v57
    %59 = vmatprep.subr.mxu0 0.0
    %v60 = vand.u32 %v54, 4294901760
    %61 = vmatpush1.msra.mxu0 %v60
    %62 = vmatprep.subr.mxu0 0.0
    %v63 = vand.u32 %v53, 4294901760
    %64 = vmatpush1.msra.mxu0 %v63
    %65 = vmatprep.subr.mxu0 0.0
    %v66 = vand.u32 %v52, 4294901760
    %67 = vmatpush1.msra.mxu0 %v66
    %68 = vmatprep.subr.mxu0 0.0
    %v69 = vand.u32 %v51, 4294901760
    %70 = vmatpush1.msra.mxu0 %v69
    %71 = vmatprep.subr.mxu0 0.0
    %v72 = vand.u32 %v50, 4294901760
    %73 = vmatpush1.msra.mxu0 %v72
    %74 = vmatprep.subr.mxu0 0.0
    %v75 = vand.u32 %v49, 4294901760
    %76 = vmatpush1.msra.mxu0 %v75
    %77 = vmatprep.subr.mxu0 0.0
    %v78 = vand.u32 %v48, 4294901760
    %79 = vmatpush1.msra.mxu0 %v78
    %80 = vmatprep.subr.mxu0 0.0
    %v81 = vand.u32 %v47, 4294901760
    %82 = vmatpush1.msra.mxu0 %v81
    %83 = vmatprep.subr.mxu0 0.0
    %v84 = vand.u32 %v46, 4294901760
    %85 = vmatpush1.msra.mxu0 %v84
    %86 = vmatprep.subr.mxu0 0.0
    %v87 = vand.u32 %v45, 4294901760
    %88 = vmatpush1.msra.mxu0 %v87
    %89 = vmatprep.subr.mxu0 0.0
    %v90 = vand.u32 %v44, 4294901760
    %91 = vmatpush1.msra.mxu0 %v90
    %92 = vmatprep.subr.mxu0 0.0
    %v93 = vand.u32 %v43, 4294901760
    %94 = vmatpush1.msra.mxu0 %v93
    %95 = vmatprep.subr.mxu0 0.0
    %v96 = vand.u32 %v42, 4294901760
    %97 = vmatpush1.msra.mxu0 %v96
    %98 = vmatprep.subr.mxu0 0.0
    %v99 = vand.u32 %v41, 4294901760
    %100 = vmatpush1.msra.mxu0 %v99
    %101 = vmatprep.subr.mxu0 0.0
    %v102 = vand.u32 %v40, 4294901760
    %103 = vmatpush1.msra.mxu0 %v102
    %104 = vmatprep.subr.mxu0 0.0
    %105 = vmatpush2.msra.mxu0 0.0
    %106 = vmatprep.subr.mxu0 0.0
    %107 = vmatpush2.msra.mxu0 0.0
    %108 = vmatprep.subr.mxu0 0.0
    %109 = vmatpush2.msra.mxu0 0.0
    %110 = vmatprep.subr.mxu0 0.0
    %111 = vmatpush2.msra.mxu0 0.0
    %112 = vmatprep.subr.mxu0 0.0
    %113 = vmatpush2.msra.mxu0 0.0
    %114 = vmatprep.subr.mxu0 0.0
    %115 = vmatpush2.msra.mxu0 0.0
    %116 = vmatprep.subr.mxu0 0.0
    %117 = vmatpush2.msra.mxu0 0.0
    %118 = vmatprep.subr.mxu0 0.0
    %119 = vmatpush2.msra.mxu0 0.0
    %120 = vmatprep.subr.mxu0 0.0
    %121 = vmatpush2.msra.mxu0 0.0
    %122 = vmatprep.subr.mxu0 0.0
    %123 = vmatpush2.msra.mxu0 0.0
    %124 = vmatprep.subr.mxu0 0.0
    %125 = vmatpush2.msra.mxu0 0.0
    %126 = vmatprep.subr.mxu0 0.0
    %127 = vmatpush2.msra.mxu0 0.0
    %128 = vmatprep.subr.mxu0 0.0
    %129 = vmatpush2.msra.mxu0 0.0
    %130 = vmatprep.subr.mxu0 0.0
    %131 = vmatpush2.msra.mxu0 0.0
    %132 = vmatprep.subr.mxu0 0.0
    %133 = vmatpush2.msra.mxu0 0.0
    %134 = vmatprep.subr.mxu0 0.0
    %135 = vmatpush2.msra.mxu0 0.0
    %136 = vmatprep.mubr.f32.mxu0 0.0
    %v137 = vand.u32 %v39, 4294901760
    %v138 = vsub.f32 %v39, %v137
    %v139 = vand.u32 %v138, 4294901760
    %v140 = vsub.f32 %v138, %v139
    %v141 = vand.u32 %v140, 4294901760
    %142 = vmatmul.mubr.f32.gmra.mxu0 %v141
    %v143 = vpop.f32.mrf.mxu0
    %v144 = vadd.f32 0.0, %v143
    %v145 = vpop.f32.mrf.mxu0
    %146 = vdwg.mxu0
    %147 = vmatprep.subr.mxu0 0.0
    %v148 = vand.u32 %v55, 4294901760
    %v149 = vsub.f32 %v55, %v148
    %v150 = vand.u32 %v149, 4294901760
    %v151 = vsub.f32 %v149, %v150
    %v152 = vand.u32 %v151, 4294901760
    %153 = vmatpush1.msra.mxu0 %v152
    %154 = vmatprep.subr.mxu0 0.0
    %v155 = vand.u32 %v54, 4294901760
    %v156 = vsub.f32 %v54, %v155
    %v157 = vand.u32 %v156, 4294901760
    %v158 = vsub.f32 %v156, %v157
    %v159 = vand.u32 %v158, 4294901760
    %160 = vmatpush1.msra.mxu0 %v159
    %161 = vmatprep.subr.mxu0 0.0
    %v162 = vand.u32 %v53, 4294901760
    %v163 = vsub.f32 %v53, %v162
    %v164 = vand.u32 %v163, 4294901760
    %v165 = vsub.f32 %v163, %v164
    %v166 = vand.u32 %v165, 4294901760
    %167 = vmatpush1.msra.mxu0 %v166
    %168 = vmatprep.subr.mxu0 0.0
    %v169 = vand.u32 %v52, 4294901760
    %v170 = vsub.f32 %v52, %v169
    %v171 = vand.u32 %v170, 4294901760
    %v172 = vsub.f32 %v170, %v171
    %v173 = vand.u32 %v172, 4294901760
    %174 = vmatpush1.msra.mxu0 %v173
    %175 = vmatprep.subr.mxu0 0.0
    %v176 = vand.u32 %v51, 4294901760
    %v177 = vsub.f32 %v51, %v176
    %v178 = vand.u32 %v177, 4294901760
    %v179 = vsub.f32 %v177, %v178
    %v180 = vand.u32 %v179, 4294901760
    %181 = vmatpush1.msra.mxu0 %v180
    %182 = vmatprep.subr.mxu0 0.0
    %v183 = vand.u32 %v50, 4294901760
    %v184 = vsub.f32 %v50, %v183
    %v185 = vand.u32 %v184, 4294901760
    %v186 = vsub.f32 %v184, %v185
    %v187 = vand.u32 %v186, 4294901760
    %188 = vmatpush1.msra.mxu0 %v187
    %189 = vmatprep.subr.mxu0 0.0
    %v190 = vand.u32 %v49, 4294901760
    %v191 = vsub.f32 %v49, %v190
    %v192 = vand.u32 %v191, 4294901760
    %v193 = vsub.f32 %v191, %v192
    %v194 = vand.u32 %v193, 4294901760
    %195 = vmatpush1.msra.mxu0 %v194
    %196 = vmatprep.subr.mxu0 0.0
    %v197 = vand.u32 %v48, 4294901760
    %v198 = vsub.f32 %v48, %v197
    %v199 = vand.u32 %v198, 4294901760
    %v200 = vsub.f32 %v198, %v199
    %v201 = vand.u32 %v200, 4294901760
    %202 = vmatpush1.msra.mxu0 %v201
    %203 = vmatprep.subr.mxu0 0.0
    %v204 = vand.u32 %v47, 4294901760
    %v205 = vsub.f32 %v47, %v204
    %v206 = vand.u32 %v205, 4294901760
    %v207 = vsub.f32 %v205, %v206
    %v208 = vand.u32 %v207, 4294901760
    %209 = vmatpush1.msra.mxu0 %v208
    %210 = vmatprep.subr.mxu0 0.0
    %v211 = vand.u32 %v46, 4294901760
    %v212 = vsub.f32 %v46, %v211
    %v213 = vand.u32 %v212, 4294901760
    %v214 = vsub.f32 %v212, %v213
    %v215 = vand.u32 %v214, 4294901760
    %216 = vmatpush1.msra.mxu0 %v215
    %217 = vmatprep.subr.mxu0 0.0
    %v218 = vand.u32 %v45, 4294901760
    %v219 = vsub.f32 %v45, %v218
    %v220 = vand.u32 %v219, 4294901760
    %v221 = vsub.f32 %v219, %v220
    %v222 = vand.u32 %v221, 4294901760
    %223 = vmatpush1.msra.mxu0 %v222
    %224 = vmatprep.subr.mxu0 0.0
    %v225 = vand.u32 %v44, 4294901760
    %v226 = vsub.f32 %v44, %v225
    %v227 = vand.u32 %v226, 4294901760
    %v228 = vsub.f32 %v226, %v227
    %v229 = vand.u32 %v228, 4294901760
    %230 = vmatpush1.msra.mxu0 %v229
    %231 = vmatprep.subr.mxu0 0.0
    %v232 = vand.u32 %v43, 4294901760
    %v233 = vsub.f32 %v43, %v232
    %v234 = vand.u32 %v233, 4294901760
    %v235 = vsub.f32 %v233, %v234
    %v236 = vand.u32 %v235, 4294901760
    %237 = vmatpush1.msra.mxu0 %v236
    %238 = vmatprep.subr.mxu0 0.0
    %v239 = vand.u32 %v42, 4294901760
    %v240 = vsub.f32 %v42, %v239
    %v241 = vand.u32 %v240, 4294901760
    %v242 = vsub.f32 %v240, %v241
    %v243 = vand.u32 %v242, 4294901760
    %244 = vmatpush1.msra.mxu0 %v243
    %245 = vmatprep.subr.mxu0 0.0
    %v246 = vand.u32 %v41, 4294901760
    %v247 = vsub.f32 %v41, %v246
    %v248 = vand.u32 %v247, 4294901760
    %v249 = vsub.f32 %v247, %v248
    %v250 = vand.u32 %v249, 4294901760
    %251 = vmatpush1.msra.mxu0 %v250
    %252 = vmatprep.subr.mxu0 0.0
    %v253 = vand.u32 %v40, 4294901760
    %v254 = vsub.f32 %v40, %v253
    %v255 = vand.u32 %v254, 4294901760
    %v256 = vsub.f32 %v254, %v255
    %v257 = vand.u32 %v256, 4294901760
    %258 = vmatpush1.msra.mxu0 %v257
    %259 = vmatprep.subr.mxu0 0.0
    %260 = vmatpush2.msra.mxu0 0.0
    %261 = vmatprep.subr.mxu0 0.0
    %262 = vmatpush2.msra.mxu0 0.0
    %263 = vmatprep.subr.mxu0 0.0
    %264 = vmatpush2.msra.mxu0 0.0
    %265 = vmatprep.subr.mxu0 0.0
    %266 = vmatpush2.msra.mxu0 0.0
    %267 = vmatprep.subr.mxu0 0.0
    %268 = vmatpush2.msra.mxu0 0.0
    %269 = vmatprep.subr.mxu0 0.0
    %270 = vmatpush2.msra.mxu0 0.0
    %271 = vmatprep.subr.mxu0 0.0
    %272 = vmatpush2.msra.mxu0 0.0
    %273 = vmatprep.subr.mxu0 0.0
    %274 = vmatpush2.msra.mxu0 0.0
    %275 = vmatprep.subr.mxu0 0.0
    %276 = vmatpush2.msra.mxu0 0.0
    %277 = vmatprep.subr.mxu0 0.0
    %278 = vmatpush2.msra.mxu0 0.0
    %279 = vmatprep.subr.mxu0 0.0
    %280 = vmatpush2.msra.mxu0 0.0
    %281 = vmatprep.subr.mxu0 0.0
    %282 = vmatpush2.msra.mxu0 0.0
    %283 = vmatprep.subr.mxu0 0.0
    %284 = vmatpush2.msra.mxu0 0.0
    %285 = vmatprep.subr.mxu0 0.0
    %286 = vmatpush2.msra.mxu0 0.0
    %287 = vmatprep.subr.mxu0 0.0
    %288 = vmatpush2.msra.mxu0 0.0
    %289 = vmatprep.subr.mxu0 0.0
    %290 = vmatpush2.msra.mxu0 0.0
    %291 = vmatprep.mubr.f32.mxu0 0.0
    %v292 = vand.u32 %v39, 4294901760
    %293 = vmatmul.mubr.f32.gmra.mxu0 %v292
    %v294 = vpop.f32.mrf.mxu0
    %v295 = vadd.f32 %v144, %v294
    %v296 = vpop.f32.mrf.mxu0
    %297 = vdwg.mxu0
    %298 = vmatprep.subr.mxu0 0.0
    %v299 = vand.u32 %v55, 4294901760
    %v300 = vsub.f32 %v55, %v299
    %301 = vmatpush1.msra.mxu0 %v300
    %302 = vmatprep.subr.mxu0 0.0
    %v303 = vand.u32 %v54, 4294901760
    %v304 = vsub.f32 %v54, %v303
    %305 = vmatpush1.msra.mxu0 %v304
    %306 = vmatprep.subr.mxu0 0.0
    %v307 = vand.u32 %v53, 4294901760
    %v308 = vsub.f32 %v53, %v307
    %309 = vmatpush1.msra.mxu0 %v308
    %310 = vmatprep.subr.mxu0 0.0
    %v311 = vand.u32 %v52, 4294901760
    %v312 = vsub.f32 %v52, %v311
    %313 = vmatpush1.msra.mxu0 %v312
    %314 = vmatprep.subr.mxu0 0.0
    %v315 = vand.u32 %v51, 4294901760
    %v316 = vsub.f32 %v51, %v315
    %317 = vmatpush1.msra.mxu0 %v316
    %318 = vmatprep.subr.mxu0 0.0
    %v319 = vand.u32 %v50, 4294901760
    %v320 = vsub.f32 %v50, %v319
    %321 = vmatpush1.msra.mxu0 %v320
    %322 = vmatprep.subr.mxu0 0.0
    %v323 = vand.u32 %v49, 4294901760
    %v324 = vsub.f32 %v49, %v323
    %325 = vmatpush1.msra.mxu0 %v324
    %326 = vmatprep.subr.mxu0 0.0
    %v327 = vand.u32 %v48, 4294901760
    %v328 = vsub.f32 %v48, %v327
    %329 = vmatpush1.msra.mxu0 %v328
    %330 = vmatprep.subr.mxu0 0.0
    %v331 = vand.u32 %v47, 4294901760
    %v332 = vsub.f32 %v47, %v331
    %333 = vmatpush1.msra.mxu0 %v332
    %334 = vmatprep.subr.mxu0 0.0
    %v335 = vand.u32 %v46, 4294901760
    %v336 = vsub.f32 %v46, %v335
    %337 = vmatpush1.msra.mxu0 %v336
    %338 = vmatprep.subr.mxu0 0.0
    %v339 = vand.u32 %v45, 4294901760
    %v340 = vsub.f32 %v45, %v339
    %341 = vmatpush1.msra.mxu0 %v340
    %342 = vmatprep.subr.mxu0 0.0
    %v343 = vand.u32 %v44, 4294901760
    %v344 = vsub.f32 %v44, %v343
    %345 = vmatpush1.msra.mxu0 %v344
    %346 = vmatprep.subr.mxu0 0.0
    %v347 = vand.u32 %v43, 4294901760
    %v348 = vsub.f32 %v43, %v347
    %349 = vmatpush1.msra.mxu0 %v348
    %350 = vmatprep.subr.mxu0 0.0
    %v351 = vand.u32 %v42, 4294901760
    %v352 = vsub.f32 %v42, %v351
    %353 = vmatpush1.msra.mxu0 %v352
    %354 = vmatprep.subr.mxu0 0.0
    %v355 = vand.u32 %v41, 4294901760
    %v356 = vsub.f32 %v41, %v355
    %357 = vmatpush1.msra.mxu0 %v356
    %358 = vmatprep.subr.mxu0 0.0
    %v359 = vand.u32 %v40, 4294901760
    %v360 = vsub.f32 %v40, %v359
    %361 = vmatpush1.msra.mxu0 %v360
    %362 = vmatprep.subr.mxu0 0.0
    %363 = vmatpush2.msra.mxu0 0.0
    %364 = vmatprep.subr.mxu0 0.0
    %365 = vmatpush2.msra.mxu0 0.0
    %366 = vmatprep.subr.mxu0 0.0
    %367 = vmatpush2.msra.mxu0 0.0
    %368 = vmatprep.subr.mxu0 0.0
    %369 = vmatpush2.msra.mxu0 0.0
    %370 = vmatprep.subr.mxu0 0.0
    %371 = vmatpush2.msra.mxu0 0.0
    %372 = vmatprep.subr.mxu0 0.0
    %373 = vmatpush2.msra.mxu0 0.0
    %374 = vmatprep.subr.mxu0 0.0
    %375 = vmatpush2.msra.mxu0 0.0
    %376 = vmatprep.subr.mxu0 0.0
    %377 = vmatpush2.msra.mxu0 0.0
    %378 = vmatprep.subr.mxu0 0.0
    %379 = vmatpush2.msra.mxu0 0.0
    %380 = vmatprep.subr.mxu0 0.0
    %381 = vmatpush2.msra.mxu0 0.0
    %382 = vmatprep.subr.mxu0 0.0
    %383 = vmatpush2.msra.mxu0 0.0
    %384 = vmatprep.subr.mxu0 0.0
    %385 = vmatpush2.msra.mxu0 0.0
    %386 = vmatprep.subr.mxu0 0.0
    %387 = vmatpush2.msra.mxu0 0.0
    %388 = vmatprep.subr.mxu0 0.0
    %389 = vmatpush2.msra.mxu0 0.0
    %390 = vmatprep.subr.mxu0 0.0
    %391 = vmatpush2.msra.mxu0 0.0
    %392 = vmatprep.subr.mxu0 0.0
    %393 = vmatpush2.msra.mxu0 0.0
    %394 = vmatprep.mubr.f32.mxu0 0.0
    %v395 = vand.u32 %v39, 4294901760
    %v396 = vsub.f32 %v39, %v395
    %397 = vmatmul.mubr.f32.gmra.mxu0 %v396
    %v398 = vpop.f32.mrf.mxu0
    %v399 = vadd.f32 %v295, %v398
    %v400 = vpop.f32.mrf.mxu0
    %401 = vdwg.mxu0
    %402 = vmatprep.subr.mxu0 0.0
    %v403 = vand.u32 %v55, 4294901760
    %404 = vmatpush1.msra.mxu0 %v403
    %405 = vmatprep.subr.mxu0 0.0
    %v406 = vand.u32 %v54, 4294901760
    %407 = vmatpush1.msra.mxu0 %v406
    %408 = vmatprep.subr.mxu0 0.0
    %v409 = vand.u32 %v53, 4294901760
    %410 = vmatpush1.msra.mxu0 %v409
    %411 = vmatprep.subr.mxu0 0.0
    %v412 = vand.u32 %v52, 4294901760
    %413 = vmatpush1.msra.mxu0 %v412
    %414 = vmatprep.subr.mxu0 0.0
    %v415 = vand.u32 %v51, 4294901760
    %416 = vmatpush1.msra.mxu0 %v415
    %417 = vmatprep.subr.mxu0 0.0
    %v418 = vand.u32 %v50, 4294901760
    %419 = vmatpush1.msra.mxu0 %v418
    %420 = vmatprep.subr.mxu0 0.0
    %v421 = vand.u32 %v49, 4294901760
    %422 = vmatpush1.msra.mxu0 %v421
    %423 = vmatprep.subr.mxu0 0.0
    %v424 = vand.u32 %v48, 4294901760
    %425 = vmatpush1.msra.mxu0 %v424
    %426 = vmatprep.subr.mxu0 0.0
    %v427 = vand.u32 %v47, 4294901760
    %428 = vmatpush1.msra.mxu0 %v427
    %429 = vmatprep.subr.mxu0 0.0
    %v430 = vand.u32 %v46, 4294901760
    %431 = vmatpush1.msra.mxu0 %v430
    %432 = vmatprep.subr.mxu0 0.0
    %v433 = vand.u32 %v45, 4294901760
    %434 = vmatpush1.msra.mxu0 %v433
    %435 = vmatprep.subr.mxu0 0.0
    %v436 = vand.u32 %v44, 4294901760
    %437 = vmatpush1.msra.mxu0 %v436
    %438 = vmatprep.subr.mxu0 0.0
    %v439 = vand.u32 %v43, 4294901760
    %440 = vmatpush1.msra.mxu0 %v439
    %441 = vmatprep.subr.mxu0 0.0
    %v442 = vand.u32 %v42, 4294901760
    %443 = vmatpush1.msra.mxu0 %v442
    %444 = vmatprep.subr.mxu0 0.0
    %v445 = vand.u32 %v41, 4294901760
    %446 = vmatpush1.msra.mxu0 %v445
    %447 = vmatprep.subr.mxu0 0.0
    %v448 = vand.u32 %v40, 4294901760
    %449 = vmatpush1.msra.mxu0 %v448
    %450 = vmatprep.subr.mxu0 0.0
    %451 = vmatpush2.msra.mxu0 0.0
    %452 = vmatprep.subr.mxu0 0.0
    %453 = vmatpush2.msra.mxu0 0.0
    %454 = vmatprep.subr.mxu0 0.0
    %455 = vmatpush2.msra.mxu0 0.0
    %456 = vmatprep.subr.mxu0 0.0
    %457 = vmatpush2.msra.mxu0 0.0
    %458 = vmatprep.subr.mxu0 0.0
    %459 = vmatpush2.msra.mxu0 0.0
    %460 = vmatprep.subr.mxu0 0.0
    %461 = vmatpush2.msra.mxu0 0.0
    %462 = vmatprep.subr.mxu0 0.0
    %463 = vmatpush2.msra.mxu0 0.0
    %464 = vmatprep.subr.mxu0 0.0
    %465 = vmatpush2.msra.mxu0 0.0
    %466 = vmatprep.subr.mxu0 0.0
    %467 = vmatpush2.msra.mxu0 0.0
    %468 = vmatprep.subr.mxu0 0.0
    %469 = vmatpush2.msra.mxu0 0.0
    %470 = vmatprep.subr.mxu0 0.0
    %471 = vmatpush2.msra.mxu0 0.0
    %472 = vmatprep.subr.mxu0 0.0
    %473 = vmatpush2.msra.mxu0 0.0
    %474 = vmatprep.subr.mxu0 0.0
    %475 = vmatpush2.msra.mxu0 0.0
    %476 = vmatprep.subr.mxu0 0.0
    %477 = vmatpush2.msra.mxu0 0.0
    %478 = vmatprep.subr.mxu0 0.0
    %479 = vmatpush2.msra.mxu0 0.0
    %480 = vmatprep.subr.mxu0 0.0
    %481 = vmatpush2.msra.mxu0 0.0
    %482 = vmatprep.mubr.f32.mxu0 0.0
    %v483 = vand.u32 %v39, 4294901760
    %v484 = vsub.f32 %v39, %v483
    %v485 = vand.u32 %v484, 4294901760
    %486 = vmatmul.mubr.f32.gmra.mxu0 %v485
    %v487 = vpop.f32.mrf.mxu0
    %v488 = vadd.f32 %v399, %v487
    %v489 = vpop.f32.mrf.mxu0
    %490 = vdwg.mxu0
    %491 = vmatprep.subr.mxu0 0.0
    %v492 = vand.u32 %v55, 4294901760
    %v493 = vsub.f32 %v55, %v492
    %v494 = vand.u32 %v493, 4294901760
    %495 = vmatpush1.msra.mxu0 %v494
    %496 = vmatprep.subr.mxu0 0.0
    %v497 = vand.u32 %v54, 4294901760
    %v498 = vsub.f32 %v54, %v497
    %v499 = vand.u32 %v498, 4294901760
    %500 = vmatpush1.msra.mxu0 %v499
    %501 = vmatprep.subr.mxu0 0.0
    %v502 = vand.u32 %v53, 4294901760
    %v503 = vsub.f32 %v53, %v502
    %v504 = vand.u32 %v503, 4294901760
    %505 = vmatpush1.msra.mxu0 %v504
    %506 = vmatprep.subr.mxu0 0.0
    %v507 = vand.u32 %v52, 4294901760
    %v508 = vsub.f32 %v52, %v507
    %v509 = vand.u32 %v508, 4294901760
    %510 = vmatpush1.msra.mxu0 %v509
    %511 = vmatprep.subr.mxu0 0.0
    %v512 = vand.u32 %v51, 4294901760
    %v513 = vsub.f32 %v51, %v512
    %v514 = vand.u32 %v513, 4294901760
    %515 = vmatpush1.msra.mxu0 %v514
    %516 = vmatprep.subr.mxu0 0.0
    %v517 = vand.u32 %v50, 4294901760
    %v518 = vsub.f32 %v50, %v517
    %v519 = vand.u32 %v518, 4294901760
    %520 = vmatpush1.msra.mxu0 %v519
    %521 = vmatprep.subr.mxu0 0.0
    %v522 = vand.u32 %v49, 4294901760
    %v523 = vsub.f32 %v49, %v522
    %v524 = vand.u32 %v523, 4294901760
    %525 = vmatpush1.msra.mxu0 %v524
    %526 = vmatprep.subr.mxu0 0.0
    %v527 = vand.u32 %v48, 4294901760
    %v528 = vsub.f32 %v48, %v527
    %v529 = vand.u32 %v528, 4294901760
    %530 = vmatpush1.msra.mxu0 %v529
    %531 = vmatprep.subr.mxu0 0.0
    %v532 = vand.u32 %v47, 4294901760
    %v533 = vsub.f32 %v47, %v532
    %v534 = vand.u32 %v533, 4294901760
    %535 = vmatpush1.msra.mxu0 %v534
    %536 = vmatprep.subr.mxu0 0.0
    %v537 = vand.u32 %v46, 4294901760
    %v538 = vsub.f32 %v46, %v537
    %v539 = vand.u32 %v538, 4294901760
    %540 = vmatpush1.msra.mxu0 %v539
    %541 = vmatprep.subr.mxu0 0.0
    %v542 = vand.u32 %v45, 4294901760
    %v543 = vsub.f32 %v45, %v542
    %v544 = vand.u32 %v543, 4294901760
    %545 = vmatpush1.msra.mxu0 %v544
    %546 = vmatprep.subr.mxu0 0.0
    %v547 = vand.u32 %v44, 4294901760
    %v548 = vsub.f32 %v44, %v547
    %v549 = vand.u32 %v548, 4294901760
    %550 = vmatpush1.msra.mxu0 %v549
    %551 = vmatprep.subr.mxu0 0.0
    %v552 = vand.u32 %v43, 4294901760
    %v553 = vsub.f32 %v43, %v552
    %v554 = vand.u32 %v553, 4294901760
    %555 = vmatpush1.msra.mxu0 %v554
    %556 = vmatprep.subr.mxu0 0.0
    %v557 = vand.u32 %v42, 4294901760
    %v558 = vsub.f32 %v42, %v557
    %v559 = vand.u32 %v558, 4294901760
    %560 = vmatpush1.msra.mxu0 %v559
    %561 = vmatprep.subr.mxu0 0.0
    %v562 = vand.u32 %v41, 4294901760
    %v563 = vsub.f32 %v41, %v562
    %v564 = vand.u32 %v563, 4294901760
    %565 = vmatpush1.msra.mxu0 %v564
    %566 = vmatprep.subr.mxu0 0.0
    %v567 = vand.u32 %v40, 4294901760
    %v568 = vsub.f32 %v40, %v567
    %v569 = vand.u32 %v568, 4294901760
    %570 = vmatpush1.msra.mxu0 %v569
    %571 = vmatprep.subr.mxu0 0.0
    %572 = vmatpush2.msra.mxu0 0.0
    %573 = vmatprep.subr.mxu0 0.0
    %574 = vmatpush2.msra.mxu0 0.0
    %575 = vmatprep.subr.mxu0 0.0
    %576 = vmatpush2.msra.mxu0 0.0
    %577 = vmatprep.subr.mxu0 0.0
    %578 = vmatpush2.msra.mxu0 0.0
    %579 = vmatprep.subr.mxu0 0.0
    %580 = vmatpush2.msra.mxu0 0.0
    %581 = vmatprep.subr.mxu0 0.0
    %582 = vmatpush2.msra.mxu0 0.0
    %583 = vmatprep.subr.mxu0 0.0
    %584 = vmatpush2.msra.mxu0 0.0
    %585 = vmatprep.subr.mxu0 0.0
    %586 = vmatpush2.msra.mxu0 0.0
    %587 = vmatprep.subr.mxu0 0.0
    %588 = vmatpush2.msra.mxu0 0.0
    %589 = vmatprep.subr.mxu0 0.0
    %590 = vmatpush2.msra.mxu0 0.0
    %591 = vmatprep.subr.mxu0 0.0
    %592 = vmatpush2.msra.mxu0 0.0
    %593 = vmatprep.subr.mxu0 0.0
    %594 = vmatpush2.msra.mxu0 0.0
    %595 = vmatprep.subr.mxu0 0.0
    %596 = vmatpush2.msra.mxu0 0.0
    %597 = vmatprep.subr.mxu0 0.0
    %598 = vmatpush2.msra.mxu0 0.0
    %599 = vmatprep.subr.mxu0 0.0
    %600 = vmatpush2.msra.mxu0 0.0
    %601 = vmatprep.subr.mxu0 0.0
    %602 = vmatpush2.msra.mxu0 0.0
    %603 = vmatprep.mubr.f32.mxu0 0.0
    %v604 = vand.u32 %v39, 4294901760
    %605 = vmatmul.mubr.f32.gmra.mxu0 %v604
    %v606 = vpop.f32.mrf.mxu0
    %v607 = vadd.f32 %v488, %v606
    %v608 = vpop.f32.mrf.mxu0
    %609 = vdwg.mxu0
    %610 = vmatprep.subr.mxu0 0.0
    %v611 = vand.u32 %v55, 4294901760
    %612 = vmatpush1.msra.mxu0 %v611
    %613 = vmatprep.subr.mxu0 0.0
    %v614 = vand.u32 %v54, 4294901760
    %615 = vmatpush1.msra.mxu0 %v614
    %616 = vmatprep.subr.mxu0 0.0
    %v617 = vand.u32 %v53, 4294901760
    %618 = vmatpush1.msra.mxu0 %v617
    %619 = vmatprep.subr.mxu0 0.0
    %v620 = vand.u32 %v52, 4294901760
    %621 = vmatpush1.msra.mxu0 %v620
    %622 = vmatprep.subr.mxu0 0.0
    %v623 = vand.u32 %v51, 4294901760
    %624 = vmatpush1.msra.mxu0 %v623
    %625 = vmatprep.subr.mxu0 0.0
    %v626 = vand.u32 %v50, 4294901760
    %627 = vmatpush1.msra.mxu0 %v626
    %628 = vmatprep.subr.mxu0 0.0
    %v629 = vand.u32 %v49, 4294901760
    %630 = vmatpush1.msra.mxu0 %v629
    %631 = vmatprep.subr.mxu0 0.0
    %v632 = vand.u32 %v48, 4294901760
    %633 = vmatpush1.msra.mxu0 %v632
    %634 = vmatprep.subr.mxu0 0.0
    %v635 = vand.u32 %v47, 4294901760
    %636 = vmatpush1.msra.mxu0 %v635
    %637 = vmatprep.subr.mxu0 0.0
    %v638 = vand.u32 %v46, 4294901760
    %639 = vmatpush1.msra.mxu0 %v638
    %640 = vmatprep.subr.mxu0 0.0
    %v641 = vand.u32 %v45, 4294901760
    %642 = vmatpush1.msra.mxu0 %v641
    %643 = vmatprep.subr.mxu0 0.0
    %v644 = vand.u32 %v44, 4294901760
    %645 = vmatpush1.msra.mxu0 %v644
    %646 = vmatprep.subr.mxu0 0.0
    %v647 = vand.u32 %v43, 4294901760
    %648 = vmatpush1.msra.mxu0 %v647
    %649 = vmatprep.subr.mxu0 0.0
    %v650 = vand.u32 %v42, 4294901760
    %651 = vmatpush1.msra.mxu0 %v650
    %652 = vmatprep.subr.mxu0 0.0
    %v653 = vand.u32 %v41, 4294901760
    %654 = vmatpush1.msra.mxu0 %v653
    %655 = vmatprep.subr.mxu0 0.0
    %v656 = vand.u32 %v40, 4294901760
    %657 = vmatpush1.msra.mxu0 %v656
    %658 = vmatprep.subr.mxu0 0.0
    %659 = vmatpush2.msra.mxu0 0.0
    %660 = vmatprep.subr.mxu0 0.0
    %661 = vmatpush2.msra.mxu0 0.0
    %662 = vmatprep.subr.mxu0 0.0
    %663 = vmatpush2.msra.mxu0 0.0
    %664 = vmatprep.subr.mxu0 0.0
    %665 = vmatpush2.msra.mxu0 0.0
    %666 = vmatprep.subr.mxu0 0.0
    %667 = vmatpush2.msra.mxu0 0.0
    %668 = vmatprep.subr.mxu0 0.0
    %669 = vmatpush2.msra.mxu0 0.0
    %670 = vmatprep.subr.mxu0 0.0
    %671 = vmatpush2.msra.mxu0 0.0
    %672 = vmatprep.subr.mxu0 0.0
    %673 = vmatpush2.msra.mxu0 0.0
    %674 = vmatprep.subr.mxu0 0.0
    %675 = vmatpush2.msra.mxu0 0.0
    %676 = vmatprep.subr.mxu0 0.0
    %677 = vmatpush2.msra.mxu0 0.0
    %678 = vmatprep.subr.mxu0 0.0
    %679 = vmatpush2.msra.mxu0 0.0
    %680 = vmatprep.subr.mxu0 0.0
    %681 = vmatpush2.msra.mxu0 0.0
    %682 = vmatprep.subr.mxu0 0.0
    %683 = vmatpush2.msra.mxu0 0.0
    %684 = vmatprep.subr.mxu0 0.0
    %685 = vmatpush2.msra.mxu0 0.0
    %686 = vmatprep.subr.mxu0 0.0
    %687 = vmatpush2.msra.mxu0 0.0
    %688 = vmatprep.subr.mxu0 0.0
    %689 = vmatpush2.msra.mxu0 0.0
    %690 = vmatprep.mubr.f32.mxu0 0.0
    %v691 = vand.u32 %v39, 4294901760
    %692 = vmatmul.mubr.f32.gmra.mxu0 %v691
    %v693 = vpop.f32.mrf.mxu0
    %v694 = vadd.f32 %v607, %v693
    %v695 = vpop.f32.mrf.mxu0
    %696 = vdwg.mxu0
    %v697 = vld [vmem:[%s1] sm:$0xff]
    %v698 = vld [vmem:[%s3] sm:$0x1]
    %700 = vset.pattern.permute.xlu0 0
    %701 = vperm.xlu0 %700, %v697
    %v702 = vpop.permute.xlu0 %701
    %v705 = vlaneseq
    %v706 = vshrl.u32 %v705, 7
    %v707 = vsub.s32 0, %v706
    %v708 = vrot.slane %v698, %v707
    %v710 = vadd.f32 %v702, %v708
    %v711 = vmul.f32 %v694, 2.0
    %v712 = vsub.f32 %v710, %v711
    %v713 = vmax.f32 %v712, 0.0
    %v714 = vmul.f32 %v713, -0.5
    %v715 = vld [vmem:[%s4] sm:$0xff]
    %v716 = vlaneseq
    %v717 = vand.u32 %v716, 127
    %s718 = smul.u32 0, 128
    %v719 = vstv %s718
    %v720 = vadd.s32 %v717, %v719
    %721 = vset.pattern.permute.xlu0 0
    %722 = vperm.xlu0 %721, %v715
    %v723 = vpop.permute.xlu0 %722
    %vm724 = vcmp.eq.s32.totalorder %v720, %v723
    %725 = vst [vmem:[#allocation5] sm:$0xff] %v714
    %v726 = vmul.f32 %v714, 1.1
    %v727 = vsel %vm724, %v726, %v714
    %728 = vst [vmem:[#allocation6] sm:$0xff] %v727
    %v729 = vsel %vm724, %v713, 0.0
    %730 = vadd.xlane.f32.xlu0 %v729
    %v731 = vpop.xlane.xlu0 %730
    %p732 = scmp.eq.s32.totalorder 0, 0
    // Predicated region
    $region26: #{tpu_custom_call.1} parent=1 // pred_check
      %p733 = pneg %p732
    $region27: #{tpu_custom_call.1} parent=1 // pred_check_branch
      %735 = sbr.rel (%p733) target = $region29
    $region28: #{tpu_custom_call.1} parent=1 // pred_region
      %vm736 = vcmask 7168
      %737 = vst.msk [vmem:[%s7] sm:$0xff] %vm736, 0.0
    $region29: #{tpu_custom_call.1} parent=1 // pred_fallthru
      _
    %v738 = vld [vmem:[%s7] sm:$0xff]
    %v739 = vadd.f32 %v738, %v731
    %vm740 = vcmask 7168
    %741 = vst.msk [vmem:[%s7] sm:$0xff] %vm740, %v739
    // Predicated region
    $region30: #{tpu_custom_call.1} parent=1 // pred_check
      _
    $region31: #{tpu_custom_call.1} parent=1 // pred_check_branch
      %743 = sbr.rel (0) target = $region33
    $region32: #{tpu_custom_call.1} parent=1 // pred_region
      %s745 = ssub.s32 128, 128
      %746 = vsyncadd [#allocation4], %s745
      %s748 = sshll.u32 [#allocation5], 4
      %s749 = int_to_ptr.vmem [resolvable:$true] %s748
      %751 = dma.vmem_to_hbm [thread:$0]  %s749, 128, %s5, [#allocation4]
    $region33: #{tpu_custom_call.1} parent=1 // pred_fallthru
      _
    // Predicated region
    $region34: #{tpu_custom_call.1} parent=1 // pred_check
      _
    $region35: #{tpu_custom_call.1} parent=1 // pred_check_branch
      %753 = sbr.rel (0) target = $region37
    $region36: #{tpu_custom_call.1} parent=1 // pred_region
      %s755 = ssub.s32 128, 128
      %756 = vsyncadd [#allocation7], %s755
      %s758 = sshll.u32 [#allocation6], 4
      %s759 = int_to_ptr.vmem [resolvable:$true] %s758
      %761 = dma.vmem_to_hbm [thread:$0]  %s759, 128, %s6, [#allocation7]
    $region37: #{tpu_custom_call.1} parent=1 // pred_fallthru
      _
    // Predicated region
    $region38: #{tpu_custom_call.1} parent=1 // pred_check
      _
    $region39: #{tpu_custom_call.1} parent=1 // pred_check_branch
      %763 = sbr.rel (0) target = $region41
    $region40: #{tpu_custom_call.1} parent=1 // pred_region
      _
    $region41: #{tpu_custom_call.1} parent=1 // pred_fallthru
      _
    // Predicated region
    $region42: #{tpu_custom_call.1} parent=1 // pred_check
      _
    $region43: #{tpu_custom_call.1} parent=1 // pred_check_branch
      %765 = sbr.rel (0) target = $region45
    $region44: #{tpu_custom_call.1} parent=1 // pred_region
      %766 = dma.done [#allocation4], 128
    $region45: #{tpu_custom_call.1} parent=1 // pred_fallthru
      _
    // Predicated region
    $region46: #{tpu_custom_call.1} parent=1 // pred_check
      _
    $region47: #{tpu_custom_call.1} parent=1 // pred_check_branch
      %768 = sbr.rel (0) target = $region49
    $region48: #{tpu_custom_call.1} parent=1 // pred_region
      %769 = dma.done [#allocation7], 128
    $region49: #{tpu_custom_call.1} parent=1 // pred_fallthru
      _
    // Predicated region
    $region50: #{tpu_custom_call.1} parent=1 // pred_check
      _
    $region51: #{tpu_custom_call.1} parent=1 // pred_check_branch
      %771 = sbr.rel (0) target = $region53
    $region52: #{tpu_custom_call.1} parent=1 // pred_region
      _
    $region53: #{tpu_custom_call.1} parent=1 // pred_fallthru
      _
    %772 = vsyncpa [#allocation3], 1
    %773 = vsyncpa [#allocation4], 1
    %774 = vsyncpa [#allocation7], 1

</llo_original>
